<compile_context>
chip_gen: v5e
topology: v5e:2x2
jax: 0.10.0
libtpu: 0.0.40
codegen_flags: <defaults>
</compile_context>

<pallas_src>
import functools
import math

import jax
import jax.numpy as jnp
from jax.experimental import pallas as pl
from jax.experimental.pallas import tpu as pltpu

_NEG = -1e30                 # "never wins the max" (tanh output is in (-1, 1))
_LOG10000 = math.log(10000.0)


def _round_up(v, m):
    return (v + m - 1) // m * m


def _sbert_head_kernel(x_ref, doy_ref, invf_ref, phase_ref, we_ref, be_ref,
                       wl_ref, bl_ref, out_ref, *, seq_len, seq_pad, tb):
    """One batch block per grid step.

    x_ref:    (TB*Lp, Fp) bf16      doy_ref:  (TB*Lp, 1) i32
    invf_ref: (1, Hp) f32           phase_ref:(1, Hp) f32
    we_ref:   (Fp, Hp) bf16         be_ref:   (1, Hp) f32
    wl_ref:   (Hp, Cp) bf16         bl_ref:   (1, Cp) f32
    out_ref:  (TB, Cp) f32
    """
    Hp = we_ref.shape[1]

    # ---- SBERT stand-in: band embedding (bf16 MXU operands, f32 accumulation) ----
    emb = jnp.dot(x_ref[...], we_ref[...],
                  preferred_element_type=jnp.float32)              # (TB*Lp, Hp) f32

    # ---- day-of-year positional encoding (hoisted constants; sin only) ----
    # pe[:, h] = sin(doy * inv_freq[h] + phase[h]); phase = pi/2 on odd lanes -> cos.
    pos = doy_ref[...].astype(jnp.float32)                         # (TB*Lp, 1)
    pe = jnp.sin(pos * invf_ref[...] + phase_ref[...])             # (TB*Lp, Hp)

    feat = jnp.tanh(emb + be_ref[...] + pe)                        # (TB*Lp, Hp) f32

    # ---- MaxPool1d(seq_len): max over the sequence axis ----
    feat3 = feat.reshape(tb, seq_pad, Hp)                          # sublane-split, layout-only
    if seq_len != seq_pad:                                         # static: only if padded
        l_idx = jax.lax.broadcasted_iota(jnp.int32, feat3.shape, 1)
        feat3 = jnp.where(l_idx < seq_len, feat3, _NEG)
    pooled = jnp.max(feat3, axis=1)                                # (TB, Hp) f32

    # ---- Linear(H -> C) on the pooled features, one matmul for the whole block ----
    out_ref[...] = (
        jnp.dot(pooled.astype(jnp.bfloat16), wl_ref[...],
                preferred_element_type=jnp.float32)
        + bl_ref[...]
    )


def _pick_batch_tile(B, Lp, target_rows=256):
    """Largest TB dividing B with TB*Lp ~ target_rows, keeping >=2 grid blocks if B >= 2."""
    tb = max(1, min(B, target_rows // Lp if Lp < target_rows else 1))
    while B % tb:
        tb -= 1
    if B >= 2 and B // tb < 2:           # leave work for both v7x TensorCores
        tb = max(1, tb // 2)
        while B % tb:
            tb -= 1
    return tb


def sbert_regression(x, doy, mask, params, *, batch_tile=None):
    """x: (B, L, F) f32, doy: (B, L) int day-of-year, mask: (B, L) (backbone-only)."""
    del mask  # TODO(synk): mask only feeds the attention of the real SBERT backbone.
    B, L, F = x.shape
    we, be, wl, bl = params["w_emb"], params["b_emb"], params["w_lin"], params["b_lin"]
    H = we.shape[1]
    C = wl.shape[1]

    # Lane/sublane-friendly padded sizes (bf16 => 16-row sublane tiling for x / w_emb).
    Fp = _round_up(F, 16)
    Hp = _round_up(H, 128)
    Cp = _round_up(C, 128)
    Lp = _round_up(L, 16)

    TB = batch_tile if batch_tile is not None else _pick_batch_tile(B, Lp)
    assert B % TB == 0
    NB = B // TB

    # ---- padded / pre-cast operands (zeros are inert through the matmuls) ----
    xp = (jnp.zeros((B, Lp, Fp), jnp.bfloat16)
          .at[:, :L, :F].set(x.astype(jnp.bfloat16))
          .reshape(B * Lp, Fp))
    doyp = (jnp.zeros((B, Lp), jnp.int32)
            .at[:, :L].set(doy.astype(jnp.int32))
            .reshape(B * Lp, 1))
    wep = jnp.zeros((Fp, Hp), jnp.bfloat16).at[:F, :H].set(we.astype(jnp.bfloat16))
    bep = jnp.zeros((1, Hp), jnp.float32).at[:, :H].set(be)
    wlp = jnp.zeros((Hp, Cp), jnp.bfloat16).at[:H, :C].set(wl.astype(jnp.bfloat16))
    blp = jnp.zeros((1, Cp), jnp.float32).at[:, :C].set(bl)

    # Hoisted PE constants: inv_freq / phase, zeroed on padded hidden lanes (pe -> 0 there).
    h_idx = jnp.arange(Hp)
    pair = (h_idx // 2).astype(jnp.float32)
    invf = jnp.where(h_idx < H, jnp.exp(pair * (-2.0 * _LOG10000 / H)),
                     0.0).astype(jnp.float32).reshape(1, Hp)
    phase = jnp.where((h_idx < H) & (h_idx % 2 == 1),
                      jnp.float32(math.pi / 2.0), 0.0).reshape(1, Hp)

    kernel = functools.partial(_sbert_head_kernel, seq_len=L, seq_pad=Lp, tb=TB)

    out = pl.pallas_call(
        kernel,
        out_shape=jax.ShapeDtypeStruct((NB, TB, Cp), jnp.float32),
        grid=(NB,),
        in_specs=[
            pl.BlockSpec((TB * Lp, Fp), lambda bi: (bi, 0)),   # x block (bf16)
            pl.BlockSpec((TB * Lp, 1), lambda bi: (bi, 0)),    # doy block (i32, 1 lane)
            pl.BlockSpec((1, Hp), lambda bi: (0, 0)),          # inv_freq (resident)
            pl.BlockSpec((1, Hp), lambda bi: (0, 0)),          # phase    (resident)
            pl.BlockSpec((Fp, Hp), lambda bi: (0, 0)),         # w_emb    (resident, bf16)
            pl.BlockSpec((1, Hp), lambda bi: (0, 0)),          # b_emb
            pl.BlockSpec((Hp, Cp), lambda bi: (0, 0)),         # w_lin    (resident, bf16)
            pl.BlockSpec((1, Cp), lambda bi: (0, 0)),          # b_lin
        ],
        out_specs=pl.BlockSpec((None, TB, Cp), lambda bi: (bi, 0, 0)),
        compiler_params=pltpu.CompilerParams(
            dimension_semantics=("parallel",),
            vmem_limit_bytes=48 * 1024 * 1024,   # safe under v7x's 64 MiB physical cap
        ),
        cost_estimate=pl.CostEstimate(
            flops=2 * B * Lp * Fp * Hp + 2 * B * Hp * Cp,
            transcendentals=2 * B * Lp * Hp,     # sin + tanh per feature element
            bytes_accessed=(2 * (xp.size + wep.size + wlp.size)
                            + 4 * (doyp.size + bep.size + blp.size
                                   + invf.size + phase.size + B * Cp)),
        ),
    )(xp, doyp, invf, phase, wep, bep, wlp, blp)

    return out.reshape(B, Cp)[:, :C]


def _reference(x, doy, mask, params):
    """Pure-JAX (f32) reference of the same forward for correctness check."""
    del mask
    B, L, F = x.shape
    we, be, wl, bl = params["w_emb"], params["b_emb"], params["w_lin"], params["b_lin"]
    H = we.shape[1]
    pos = doy.astype(jnp.float32)[..., None]                       # (B, L, 1)
    half = jnp.arange(H // 2, dtype=jnp.float32)
    inv_freq = jnp.exp(half * (-2.0 * _LOG10000 / H))              # (H/2,)
    ang = pos * inv_freq                                           # (B, L, H/2)
    pe = jnp.stack([jnp.sin(ang), jnp.cos(ang)], axis=-1).reshape(B, L, H)
    feat = jnp.tanh(jnp.einsum("blf,fh->blh", x, we) + be[None] + pe)
    pooled = jnp.max(feat, axis=1)                                 # (B, H)
    return pooled @ wl + bl                                        # (B, C)


if __name__ == "__main__":
    # batch, seq_len (max_len), spectral bands, sbert.hidden, num_classes
    B, L, F, H, C = 2, 12, 10, 32, 5

    key = jax.random.PRNGKey(0)
    k_x, k_we, k_be, k_wl, k_bl, k_doy = jax.random.split(key, 6)

    x = jax.random.normal(k_x, (B, L, F), dtype=jnp.float32)
    doy = jax.random.randint(k_doy, (B, L), 1, 366, dtype=jnp.int32)
    mask = jnp.ones((B, L), dtype=jnp.int32)

    params = {
        "w_emb": jax.random.normal(k_we, (F, H), dtype=jnp.float32) * 0.1,
        "b_emb": jax.random.normal(k_be, (1, H), dtype=jnp.float32) * 0.1,
        "w_lin": jax.random.normal(k_wl, (H, C), dtype=jnp.float32) * 0.1,
        "b_lin": jax.random.normal(k_bl, (1, C), dtype=jnp.float32) * 0.1,
    }

    out = jax.block_until_ready(sbert_regression(x, doy, mask, params))
    ref = jax.block_until_ready(_reference(x, doy, mask, params))
    assert out.shape == (B, C)
    # tolerance accounts for bf16 x / weight MXU operands (reference is full f32)
    assert jnp.allclose(out, ref, atol=5e-2, rtol=5e-2), jnp.max(jnp.abs(out - ref))
    print("KERNEL_OK")
</pallas_src>

<mosaic_0001>
module attributes {stable_mosaic.version = 11 : i64} {
  func.func @_sbert_head_kernel(%arg0: i32, %arg1: memref<16x16xbf16, #tpu.memory_space<vmem>>, %arg2: memref<16x1xi32, #tpu.memory_space<vmem>>, %arg3: memref<1x128xf32, #tpu.memory_space<vmem>>, %arg4: memref<1x128xf32, #tpu.memory_space<vmem>>, %arg5: memref<16x128xbf16, #tpu.memory_space<vmem>>, %arg6: memref<1x128xf32, #tpu.memory_space<vmem>>, %arg7: memref<128x128xbf16, #tpu.memory_space<vmem>>, %arg8: memref<1x128xf32, #tpu.memory_space<vmem>>, %arg9: memref<1x1x128xf32, #tpu.memory_space<vmem>>) attributes {dimension_semantics = [#tpu.dimension_semantics<parallel>], iteration_bounds = array<i64: 2>, scalar_prefetch = 0 : i64, scratch_operands = 0 : i64, tpu.core_type = #tpu.core_type<tc>, window_params = [{transform_indices = @transform_0, window_bounds = array<i64: 16, 16>}, {transform_indices = @transform_1, window_bounds = array<i64: 16, 1>}, {pipeline_mode = #tpu.pipeline_mode<synchronous>, transform_indices = @transform_2, window_bounds = array<i64: 1, 128>}, {pipeline_mode = #tpu.pipeline_mode<synchronous>, transform_indices = @transform_3, window_bounds = array<i64: 1, 128>}, {pipeline_mode = #tpu.pipeline_mode<synchronous>, transform_indices = @transform_4, window_bounds = array<i64: 16, 128>}, {pipeline_mode = #tpu.pipeline_mode<synchronous>, transform_indices = @transform_5, window_bounds = array<i64: 1, 128>}, {pipeline_mode = #tpu.pipeline_mode<synchronous>, transform_indices = @transform_6, window_bounds = array<i64: 128, 128>}, {pipeline_mode = #tpu.pipeline_mode<synchronous>, transform_indices = @transform_7, window_bounds = array<i64: 1, 128>}, {transform_indices = @transform_8, window_bounds = array<i64: 1, 1, 128>}]} {
    %c0 = arith.constant 0 : index
    %c0_0 = arith.constant 0 : index
    %0 = vector.load %arg1[%c0, %c0_0] : memref<16x16xbf16, #tpu.memory_space<vmem>>, vector<16x16xbf16>
    %c0_1 = arith.constant 0 : index
    %c0_2 = arith.constant 0 : index
    %1 = vector.load %arg5[%c0_1, %c0_2] : memref<16x128xbf16, #tpu.memory_space<vmem>>, vector<16x128xbf16>
    %cst = arith.constant dense<0.000000e+00> : vector<16x128xf32>
    %2 = tpu.matmul %0, %1, %cst {dimension_numbers = #tpu.dot_dimension_numbers<[1], [0], [0], [1], [0, 0, 1, 1], [], []>} : vector<16x16xbf16>, vector<16x128xbf16>, vector<16x128xf32> -> vector<16x128xf32>
    %c0_3 = arith.constant 0 : index
    %c0_4 = arith.constant 0 : index
    %3 = vector.load %arg2[%c0_3, %c0_4] : memref<16x1xi32, #tpu.memory_space<vmem>>, vector<16x1xi32>
    %4 = arith.sitofp %3 : vector<16x1xi32> to vector<16x1xf32>
    %c0_5 = arith.constant 0 : index
    %c0_6 = arith.constant 0 : index
    %5 = vector.load %arg3[%c0_5, %c0_6] : memref<1x128xf32, #tpu.memory_space<vmem>>, vector<1x128xf32>
    %6 = vector.broadcast %4 : vector<16x1xf32> to vector<16x128xf32>
    %7 = vector.broadcast %5 : vector<1x128xf32> to vector<16x128xf32>
    %8 = arith.mulf %6, %7 : vector<16x128xf32>
    %c0_7 = arith.constant 0 : index
    %c0_8 = arith.constant 0 : index
    %9 = vector.load %arg4[%c0_7, %c0_8] : memref<1x128xf32, #tpu.memory_space<vmem>>, vector<1x128xf32>
    %10 = vector.broadcast %9 : vector<1x128xf32> to vector<16x128xf32>
    %11 = arith.addf %8, %10 : vector<16x128xf32>
    %12 = math.sin %11 : vector<16x128xf32>
    %c0_9 = arith.constant 0 : index
    %c0_10 = arith.constant 0 : index
    %13 = vector.load %arg6[%c0_9, %c0_10] : memref<1x128xf32, #tpu.memory_space<vmem>>, vector<1x128xf32>
    %14 = vector.broadcast %13 : vector<1x128xf32> to vector<16x128xf32>
    %15 = arith.addf %2, %14 : vector<16x128xf32>
    %16 = arith.addf %15, %12 : vector<16x128xf32>
    %17 = math.tanh %16 : vector<16x128xf32>
    %18 = vector.shape_cast %17 : vector<16x128xf32> to vector<1x16x128xf32>
    %19 = tpu.iota {dimensions = array<i32: 1>} : vector<1x16x128xi32>
    %c12_i32 = arith.constant 12 : i32
    %20 = vector.broadcast %c12_i32 : i32 to vector<1x16x128xi32>
    %21 = arith.cmpi slt, %19, %20 : vector<1x16x128xi32>
    %cst_11 = arith.constant -1.000000e+30 : f32
    %22 = vector.broadcast %cst_11 : f32 to vector<1x16x128xf32>
    %23 = arith.select %21, %18, %22 : vector<1x16x128xi1>, vector<1x16x128xf32>
    %cst_12 = arith.constant dense<0xFF800000> : vector<1x128xf32>
    %24 = vector.multi_reduction <maximumf>, %23, %cst_12 [1] : vector<1x16x128xf32> to vector<1x128xf32>
    %25 = arith.truncf %24 : vector<1x128xf32> to vector<1x128xbf16>
    %c0_13 = arith.constant 0 : index
    %c0_14 = arith.constant 0 : index
    %26 = vector.load %arg7[%c0_13, %c0_14] : memref<128x128xbf16, #tpu.memory_space<vmem>>, vector<128x128xbf16>
    %cst_15 = arith.constant dense<0.000000e+00> : vector<1x128xf32>
    %27 = tpu.matmul %25, %26, %cst_15 {dimension_numbers = #tpu.dot_dimension_numbers<[1], [0], [0], [1], [0, 0, 1, 1], [], []>} : vector<1x128xbf16>, vector<128x128xbf16>, vector<1x128xf32> -> vector<1x128xf32>
    %c0_16 = arith.constant 0 : index
    %c0_17 = arith.constant 0 : index
    %28 = vector.load %arg8[%c0_16, %c0_17] : memref<1x128xf32, #tpu.memory_space<vmem>>, vector<1x128xf32>
    %29 = arith.addf %27, %28 : vector<1x128xf32>
    %c0_18 = arith.constant 0 : index
    %c0_19 = arith.constant 0 : index
    %c0_20 = arith.constant 0 : index
    %30 = vector.load %arg9[%c0_18, %c0_19, %c0_20] : memref<1x1x128xf32, #tpu.memory_space<vmem>>, vector<1x1x128xf32>
    %31 = vector.shape_cast %30 : vector<1x1x128xf32> to vector<1x128xf32>
    %32 = vector.shape_cast %29 : vector<1x128xf32> to vector<1x1x128xf32>
    tpu.vector_store %arg9[%c0_18, %c0_19, %c0_20], %32 {strides = array<i32>} : memref<1x1x128xf32, #tpu.memory_space<vmem>>, vector<1x1x128xf32>,
    return
  }
  func.func @transform_0(%arg0: i32) -> (i32, i32) {
    %c0_i32 = arith.constant 0 : i32
    %c0_i32_0 = arith.constant 0 : i32
    return %arg0, %c0_i32 : i32, i32
  }
  func.func @transform_1(%arg0: i32) -> (i32, i32) {
    %c0_i32 = arith.constant 0 : i32
    %c0_i32_0 = arith.constant 0 : i32
    return %arg0, %c0_i32 : i32, i32
  }
  func.func @transform_2(%arg0: i32) -> (i32, i32) {
    %c0_i32 = arith.constant 0 : i32
    %c0_i32_0 = arith.constant 0 : i32
    %c0_i32_1 = arith.constant 0 : i32
    return %c0_i32, %c0_i32_0 : i32, i32
  }
  func.func @transform_3(%arg0: i32) -> (i32, i32) {
    %c0_i32 = arith.constant 0 : i32
    %c0_i32_0 = arith.constant 0 : i32
    %c0_i32_1 = arith.constant 0 : i32
    return %c0_i32, %c0_i32_0 : i32, i32
  }
  func.func @transform_4(%arg0: i32) -> (i32, i32) {
    %c0_i32 = arith.constant 0 : i32
    %c0_i32_0 = arith.constant 0 : i32
    %c0_i32_1 = arith.constant 0 : i32
    return %c0_i32, %c0_i32_0 : i32, i32
  }
  func.func @transform_5(%arg0: i32) -> (i32, i32) {
    %c0_i32 = arith.constant 0 : i32
    %c0_i32_0 = arith.constant 0 : i32
    %c0_i32_1 = arith.constant 0 : i32
    return %c0_i32, %c0_i32_0 : i32, i32
  }
  func.func @transform_6(%arg0: i32) -> (i32, i32) {
    %c0_i32 = arith.constant 0 : i32
    %c0_i32_0 = arith.constant 0 : i32
    %c0_i32_1 = arith.constant 0 : i32
    return %c0_i32, %c0_i32_0 : i32, i32
  }
  func.func @transform_7(%arg0: i32) -> (i32, i32) {
    %c0_i32 = arith.constant 0 : i32
    %c0_i32_0 = arith.constant 0 : i32
    %c0_i32_1 = arith.constant 0 : i32
    return %c0_i32, %c0_i32_0 : i32, i32
  }
  func.func @transform_8(%arg0: i32) -> (i32, i32, i32) {
    %c0_i32 = arith.constant 0 : i32
    %c0_i32_0 = arith.constant 0 : i32
    %c0_i32_1 = arith.constant 0 : i32
    return %arg0, %c0_i32, %c0_i32_0 : i32, i32, i32
  }
}

</mosaic_0001>

<llo_original>
// kernel: tpu_custom_call.1
$region0: #{tpu_custom_call.1}
  #allocation0 [shape = 'u32[]', space=smem, size = 0x4, offset = 0x4, fixed_abs, tag = 'smem constant byte address 0x4 - core index']
  #allocation1 [shape = 'u32[72,128]{1,0:T(1,128)}', space=vmem, size = 0x9000, scoped, tag = 'internal scratch']
  %s0 = inlined_call_operand.vmem [shape: bf16[32,16], index: 0, kind: input, shape index: {}]
  %s1 = inlined_call_operand.vmem [shape: s32[32,1], index: 1, kind: input, shape index: {}]
  %s2 = inlined_call_operand.vmem [shape: f32[1,128], index: 2, kind: input, shape index: {}]
  %s3 = inlined_call_operand.vmem [shape: f32[1,128], index: 3, kind: input, shape index: {}]
  %s4 = inlined_call_operand.vmem [shape: bf16[16,128], index: 4, kind: input, shape index: {}]
  %s5 = inlined_call_operand.vmem [shape: f32[1,128], index: 5, kind: input, shape index: {}]
  %s6 = inlined_call_operand.hbm [shape: bf16[128,128], index: 6, kind: input, shape index: {}]
  %s7 = inlined_call_operand.vmem [shape: f32[1,128], index: 7, kind: input, shape index: {}]
  %s8 = inlined_call_operand.hbm [shape: f32[2,1,128], index: 8, kind: output, shape index: {}]
  %s9 = sld [smem:[#allocation0]]
  $region69: #{tpu_custom_call.1} parent=0
    _
  %s11 = ssub.s32 1, %s9
  %s12 = scalar_select 0, %s11, %s9
  $region1: #{tpu_custom_call.1} parent=0
    #allocation2 [shape = 'u8[32768]{0}', space=vmem, size = 0x8000, scoped, tag = 'input window, operand 6, single buffered']
    #allocation3 [shape = 's32[2]{0}', space=sflag, size = 0x8, scoped, tag = 'scoped memory for tpu_custom_call.1']
    #allocation4 [shape = 's32[2]{0}', space=sflag, size = 0x8, scoped, tag = 'scoped memory for tpu_custom_call.1']
    #allocation5 [shape = 'u8[1024]{0}', space=vmem, size = 0x400, scoped, tag = 'output window, operand 0']
    %13 = vsyncpa [#allocation3], 0
    %14 = vsyncpa [#allocation4], 0
    %s15 = scalar_lea.sflag [#allocation4], 1
    %16 = vsyncpa %s15, 0
    loop: start=0, step=1, limit=4
    $region2: #{tpu_custom_call.1} parent=1 // loop_pre_header
      _
    $region3: #{tpu_custom_call.1} parent=1 // loop_header
      %s18 = sphi 0, %s22
      %p19 = scmp.ge.s32.totalorder %s18, 4
      %s28 = sphi 0, %s30
      %s31 = sphi 0, %s28
      %s32 = sphi 0, %s31
      %s48 = sphi 0, %s32
      %s54 = sphi 0, %s56
      %s57 = sphi 0, %s54
      %s58 = sphi 0, %s57
      %s74 = sphi 0, %s58
      %s78 = sphi 0, %s78
      %s80 = sphi 0, %s78
      %s81 = sphi 0, %s80
      %s95 = sphi 0, %s81
      %s99 = sphi 0, %s99
      %s101 = sphi 0, %s99
      %s102 = sphi 0, %s101
      %s116 = sphi 0, %s102
      %s120 = sphi 0, %s120
      %s122 = sphi 0, %s120
      %s123 = sphi 0, %s122
      %s137 = sphi 0, %s123
      %s141 = sphi 0, %s141
      %s143 = sphi 0, %s141
      %s144 = sphi 0, %s143
      %s158 = sphi 0, %s144
      %s162 = sphi 0, %s162
      %s164 = sphi 0, %s162
      %s165 = sphi 0, %s164
      %s179 = sphi 0, %s165
      %s183 = sphi 0, %s183
      %s185 = sphi 0, %s183
      %s186 = sphi 0, %s185
      %s200 = sphi 0, %s186
      %s206 = sphi 0, %s208
      %s209 = sphi 0, %s206
      %s210 = sphi 0, %s209
      %s226 = sphi 0, %s210
    $region4: #{tpu_custom_call.1} parent=1 // loop_header_branch
      %21 = sbr.rel (%p19) target = $region8
    $region5: #{tpu_custom_call.1} parent=1 // loop_body
      %s23 = ssub.s32 %s18, 1
      %s24 = ssub.s32 %s18, 2
      %s25 = sadd.s32 %s18, 1
      %s26 = ssub.s32 %s18, %s25
      %p27 = scmp.eq.s32.totalorder %s26, 0
      %s29 = sadd.s32 %s28, 1
      %s30 = scalar_select %p27, %s28, %s29
      %p33 = pneg %p27
      %p34 = scmp.eq.s32.totalorder %s18, 1
      %p35 = por %p33, %p34
      %p36 = scmp.ne.s32.totalorder %s28, %s31
      %p37 = scmp.eq.s32.totalorder %s18, 0
      %p38 = por %p36, %p37
      %p39 = scmp.ne.s32.totalorder %s28, %s31
      %p40 = scmp.eq.s32.totalorder %s23, 1
      %p41 = por %p39, %p40
      %p42 = scmp.ne.s32.totalorder %s31, %s32
      %p43 = scmp.eq.s32.totalorder %s23, 0
      %p44 = por %p42, %p43
      %p45 = scmp.ne.s32.totalorder %s31, %s32
      %p46 = scmp.eq.s32.totalorder %s24, 1
      %p47 = por %p45, %p46
      %p49 = scmp.ne.s32.totalorder %s32, %s48
      %p50 = scmp.eq.s32.totalorder %s24, 0
      %p51 = por %p49, %p50
      %s52 = ssub.s32 %s18, %s25
      %p53 = scmp.eq.s32.totalorder %s52, 0
      %s55 = sadd.s32 %s54, 1
      %s56 = scalar_select %p53, %s54, %s55
      %p59 = pneg %p53
      %p60 = scmp.eq.s32.totalorder %s18, 1
      %p61 = por %p59, %p60
      %p62 = scmp.ne.s32.totalorder %s54, %s57
      %p63 = scmp.eq.s32.totalorder %s18, 0
      %p64 = por %p62, %p63
      %p65 = scmp.ne.s32.totalorder %s54, %s57
      %p66 = scmp.eq.s32.totalorder %s23, 1
      %p67 = por %p65, %p66
      %p68 = scmp.ne.s32.totalorder %s57, %s58
      %p69 = scmp.eq.s32.totalorder %s23, 0
      %p70 = por %p68, %p69
      %p71 = scmp.ne.s32.totalorder %s57, %s58
      %p72 = scmp.eq.s32.totalorder %s24, 1
      %p73 = por %p71, %p72
      %p75 = scmp.ne.s32.totalorder %s58, %s74
      %p76 = scmp.eq.s32.totalorder %s24, 0
      %p77 = por %p75, %p76
      %s79 = sadd.s32 %s78, 1
      %p82 = scmp.eq.s32.totalorder %s18, 1
      %p83 = scmp.ne.s32.totalorder %s78, %s80
      %p84 = scmp.eq.s32.totalorder %s18, 0
      %p85 = por %p83, %p84
      %p86 = scmp.ne.s32.totalorder %s78, %s80
      %p87 = scmp.eq.s32.totalorder %s23, 1
      %p88 = por %p86, %p87
      %p89 = scmp.ne.s32.totalorder %s80, %s81
      %p90 = scmp.eq.s32.totalorder %s23, 0
      %p91 = por %p89, %p90
      %p92 = scmp.ne.s32.totalorder %s80, %s81
      %p93 = scmp.eq.s32.totalorder %s24, 1
      %p94 = por %p92, %p93
      %p96 = scmp.ne.s32.totalorder %s81, %s95
      %p97 = scmp.eq.s32.totalorder %s24, 0
      %p98 = por %p96, %p97
      %s100 = sadd.s32 %s99, 1
      %p103 = scmp.eq.s32.totalorder %s18, 1
      %p104 = scmp.ne.s32.totalorder %s99, %s101
      %p105 = scmp.eq.s32.totalorder %s18, 0
      %p106 = por %p104, %p105
      %p107 = scmp.ne.s32.totalorder %s99, %s101
      %p108 = scmp.eq.s32.totalorder %s23, 1
      %p109 = por %p107, %p108
      %p110 = scmp.ne.s32.totalorder %s101, %s102
      %p111 = scmp.eq.s32.totalorder %s23, 0
      %p112 = por %p110, %p111
      %p113 = scmp.ne.s32.totalorder %s101, %s102
      %p114 = scmp.eq.s32.totalorder %s24, 1
      %p115 = por %p113, %p114
      %p117 = scmp.ne.s32.totalorder %s102, %s116
      %p118 = scmp.eq.s32.totalorder %s24, 0
      %p119 = por %p117, %p118
      %s121 = sadd.s32 %s120, 1
      %p124 = scmp.eq.s32.totalorder %s18, 1
      %p125 = scmp.ne.s32.totalorder %s120, %s122
      %p126 = scmp.eq.s32.totalorder %s18, 0
      %p127 = por %p125, %p126
      %p128 = scmp.ne.s32.totalorder %s120, %s122
      %p129 = scmp.eq.s32.totalorder %s23, 1
      %p130 = por %p128, %p129
      %p131 = scmp.ne.s32.totalorder %s122, %s123
      %p132 = scmp.eq.s32.totalorder %s23, 0
      %p133 = por %p131, %p132
      %p134 = scmp.ne.s32.totalorder %s122, %s123
      %p135 = scmp.eq.s32.totalorder %s24, 1
      %p136 = por %p134, %p135
      %p138 = scmp.ne.s32.totalorder %s123, %s137
      %p139 = scmp.eq.s32.totalorder %s24, 0
      %p140 = por %p138, %p139
      %s142 = sadd.s32 %s141, 1
      %p145 = scmp.eq.s32.totalorder %s18, 1
      %p146 = scmp.ne.s32.totalorder %s141, %s143
      %p147 = scmp.eq.s32.totalorder %s18, 0
      %p148 = por %p146, %p147
      %p149 = scmp.ne.s32.totalorder %s141, %s143
      %p150 = scmp.eq.s32.totalorder %s23, 1
      %p151 = por %p149, %p150
      %p152 = scmp.ne.s32.totalorder %s143, %s144
      %p153 = scmp.eq.s32.totalorder %s23, 0
      %p154 = por %p152, %p153
      %p155 = scmp.ne.s32.totalorder %s143, %s144
      %p156 = scmp.eq.s32.totalorder %s24, 1
      %p157 = por %p155, %p156
      %p159 = scmp.ne.s32.totalorder %s144, %s158
      %p160 = scmp.eq.s32.totalorder %s24, 0
      %p161 = por %p159, %p160
      %s163 = sadd.s32 %s162, 1
      %p166 = scmp.eq.s32.totalorder %s18, 1
      %p167 = scmp.ne.s32.totalorder %s162, %s164
      %p168 = scmp.eq.s32.totalorder %s18, 0
      %p169 = por %p167, %p168
      %p170 = scmp.ne.s32.totalorder %s162, %s164
      %p171 = scmp.eq.s32.totalorder %s23, 1
      %p172 = por %p170, %p171
      %p173 = scmp.ne.s32.totalorder %s164, %s165
      %p174 = scmp.eq.s32.totalorder %s23, 0
      %p175 = por %p173, %p174
      %p176 = scmp.ne.s32.totalorder %s164, %s165
      %p177 = scmp.eq.s32.totalorder %s24, 1
      %p178 = por %p176, %p177
      %p180 = scmp.ne.s32.totalorder %s165, %s179
      %p181 = scmp.eq.s32.totalorder %s24, 0
      %p182 = por %p180, %p181
      %s184 = sadd.s32 %s183, 1
      %p187 = scmp.eq.s32.totalorder %s18, 1
      %p188 = scmp.ne.s32.totalorder %s183, %s185
      %p189 = scmp.eq.s32.totalorder %s18, 0
      %p190 = por %p188, %p189
      %p191 = scmp.ne.s32.totalorder %s183, %s185
      %p192 = scmp.eq.s32.totalorder %s23, 1
      %p193 = por %p191, %p192
      %p194 = scmp.ne.s32.totalorder %s185, %s186
      %p195 = scmp.eq.s32.totalorder %s23, 0
      %p196 = por %p194, %p195
      %p197 = scmp.ne.s32.totalorder %s185, %s186
      %p198 = scmp.eq.s32.totalorder %s24, 1
      %p199 = por %p197, %p198
      %p201 = scmp.ne.s32.totalorder %s186, %s200
      %p202 = scmp.eq.s32.totalorder %s24, 0
      %p203 = por %p201, %p202
      %s204 = ssub.s32 %s18, %s25
      %p205 = scmp.eq.s32.totalorder %s204, 0
      %s207 = sadd.s32 %s206, 1
      %s208 = scalar_select %p205, %s206, %s207
      %p211 = pneg %p205
      %p212 = scmp.eq.s32.totalorder %s18, 1
      %p213 = por %p211, %p212
      %p214 = scmp.ne.s32.totalorder %s206, %s209
      %p215 = scmp.eq.s32.totalorder %s18, 0
      %p216 = por %p214, %p215
      %p217 = scmp.ne.s32.totalorder %s206, %s209
      %p218 = scmp.eq.s32.totalorder %s23, 1
      %p219 = por %p217, %p218
      %p220 = scmp.ne.s32.totalorder %s209, %s210
      %p221 = scmp.eq.s32.totalorder %s23, 0
      %p222 = por %p220, %p221
      %p223 = scmp.ne.s32.totalorder %s209, %s210
      %p224 = scmp.eq.s32.totalorder %s24, 1
      %p225 = por %p223, %p224
      %p227 = scmp.ne.s32.totalorder %s210, %s226
      %p228 = scmp.eq.s32.totalorder %s24, 0
      %p229 = por %p227, %p228
      %p230 = scmp.le.s32.totalorder 1, %s18
      %p231 = scmp.lt.s32.totalorder %s18, 3
      %p232 = pnand %p230, %p231
      %p233 = pneg %p232
      // Predicated region
      $region9: #{tpu_custom_call.1} parent=5 // pred_check
        _
      $region10: #{tpu_custom_call.1} parent=5 // pred_check_branch
        %235 = sbr.rel (%p232) target = $region12
      $region11: #{tpu_custom_call.1} parent=5 // pred_region
        %s236 = ssub.s32 %s18, 1
        // Predicated region
        $region13: #{tpu_custom_call.1} parent=11 // pred_check
          %p237 = pneg %p91
        $region14: #{tpu_custom_call.1} parent=11 // pred_check_branch
          %239 = sbr.rel (%p237) target = $region16
        $region15: #{tpu_custom_call.1} parent=11 // pred_region
          _
        $region16: #{tpu_custom_call.1} parent=11 // pred_fallthru
          _
        // Predicated region
        $region17: #{tpu_custom_call.1} parent=11 // pred_check
          %p240 = pneg %p112
        $region18: #{tpu_custom_call.1} parent=11 // pred_check_branch
          %242 = sbr.rel (%p240) target = $region20
        $region19: #{tpu_custom_call.1} parent=11 // pred_region
          _
        $region20: #{tpu_custom_call.1} parent=11 // pred_fallthru
          _
        // Predicated region
        $region21: #{tpu_custom_call.1} parent=11 // pred_check
          %p243 = pneg %p133
        $region22: #{tpu_custom_call.1} parent=11 // pred_check_branch
          %245 = sbr.rel (%p243) target = $region24
        $region23: #{tpu_custom_call.1} parent=11 // pred_region
          _
        $region24: #{tpu_custom_call.1} parent=11 // pred_fallthru
          _
        // Predicated region
        $region25: #{tpu_custom_call.1} parent=11 // pred_check
          %p246 = pneg %p154
        $region26: #{tpu_custom_call.1} parent=11 // pred_check_branch
          %248 = sbr.rel (%p246) target = $region28
        $region27: #{tpu_custom_call.1} parent=11 // pred_region
          _
        $region28: #{tpu_custom_call.1} parent=11 // pred_fallthru
          _
        // Predicated region
        $region29: #{tpu_custom_call.1} parent=11 // pred_check
          %p249 = pneg %p175
        $region30: #{tpu_custom_call.1} parent=11 // pred_check_branch
          %251 = sbr.rel (%p249) target = $region32
        $region31: #{tpu_custom_call.1} parent=11 // pred_region
          %253 = vsyncadd [#allocation3], 0
          %s254 = sshll.u32 %s6, 4
          %s255 = int_to_ptr.hbm [resolvable:$true] %s254
          %s256 = sshll.u32 [#allocation2], 4
          %s257 = int_to_ptr.vmem [resolvable:$true] %s256
          %262 = dma.hbm_to_vmem [thread:$0]  %s255, 1024, %s257, [#allocation3], 64, 64, 4
        $region32: #{tpu_custom_call.1} parent=11 // pred_fallthru
          _
        // Predicated region
        $region33: #{tpu_custom_call.1} parent=11 // pred_check
          %p263 = pneg %p196
        $region34: #{tpu_custom_call.1} parent=11 // pred_check_branch
          %265 = sbr.rel (%p263) target = $region36
        $region35: #{tpu_custom_call.1} parent=11 // pred_region
          _
        $region36: #{tpu_custom_call.1} parent=11 // pred_fallthru
          _
      $region12: #{tpu_custom_call.1} parent=5 // pred_fallthru
        _
      %p266 = scmp.lt.s32.totalorder %s18, 2
      // Predicated region
      $region37: #{tpu_custom_call.1} parent=5 // pred_check
        %p267 = pneg %p266
      $region38: #{tpu_custom_call.1} parent=5 // pred_check_branch
        %269 = sbr.rel (%p267) target = $region40
      $region39: #{tpu_custom_call.1} parent=5 // pred_region
        // Predicated region
        $region41: #{tpu_custom_call.1} parent=39 // pred_check
          %p270 = pneg %p38
        $region42: #{tpu_custom_call.1} parent=39 // pred_check_branch
          %272 = sbr.rel (%p270) target = $region44
        $region43: #{tpu_custom_call.1} parent=39 // pred_region
          %s273 = smul.u32 2, %s18
          %p274 = scmp.lt.s32.totalorder %s273, 3
          %s275 = scalar_select %p274, %s273, 3
          %s276 = smul.addr %s275, 4
          %s277 = scalar_lea.vmem %s0, %s276
          %s278 = smul.u32 2, %s18
        $region44: #{tpu_custom_call.1} parent=39 // pred_fallthru
          _
        // Predicated region
        $region45: #{tpu_custom_call.1} parent=39 // pred_check
          %p279 = pneg %p64
        $region46: #{tpu_custom_call.1} parent=39 // pred_check_branch
          %281 = sbr.rel (%p279) target = $region48
        $region47: #{tpu_custom_call.1} parent=39 // pred_region
          %s282 = smul.u32 2, %s18
          %p283 = scmp.lt.s32.totalorder %s282, 3
          %s284 = scalar_select %p283, %s282, 3
          %s285 = smul.addr %s284, 8
          %s286 = scalar_lea.vmem %s1, %s285
          %s287 = smul.u32 2, %s18
        $region48: #{tpu_custom_call.1} parent=39 // pred_fallthru
          _
      $region40: #{tpu_custom_call.1} parent=5 // pred_fallthru
        _
      %p288 = scmp.le.s32.totalorder 1, %s18
      %p289 = scmp.lt.s32.totalorder %s18, 3
      %p290 = pnand %p288, %p289
      %p291 = pneg %p290
      // Predicated region
      $region49: #{tpu_custom_call.1} parent=5 // pred_check
        _
      $region50: #{tpu_custom_call.1} parent=5 // pred_check_branch
        %293 = sbr.rel (%p290) target = $region52
      $region51: #{tpu_custom_call.1} parent=5 // pred_region
        %s294 = ssub.s32 %s18, 1
        // Predicated region
        $region53: #{tpu_custom_call.1} parent=51 // pred_check
          %p295 = pneg %p175
        $region54: #{tpu_custom_call.1} parent=51 // pred_check_branch
          %297 = sbr.rel (%p295) target = $region56
        $region55: #{tpu_custom_call.1} parent=51 // pred_region
          %299 = dma.done [#allocation3], 1024
        $region56: #{tpu_custom_call.1} parent=51 // pred_fallthru
          _
        %s300 = smul.u32 2, %s23
        %p301 = scmp.lt.s32.totalorder %s300, 3
        %s302 = scalar_select %p301, %s300, 3
        %s303 = smul.addr %s302, 4
        %s304 = scalar_lea.vmem %s0, %s303
        %p305 = pneg %p44
        %p306 = pneg %p41
        %s307 = smul.u32 2, %s23
        %p308 = scmp.lt.s32.totalorder %s307, 3
        %s309 = scalar_select %p308, %s307, 3
        %s310 = smul.addr %s309, 8
        %s311 = scalar_lea.vmem %s1, %s310
        %p312 = pneg %p70
        %p313 = pneg %p67
        %p314 = pneg %p91
        %p315 = pneg %p88
        %p316 = pneg %p112
        %p317 = pneg %p109
        %p318 = pneg %p133
        %p319 = pneg %p130
        %p320 = pneg %p154
        %p321 = pneg %p151
        %p322 = pneg %p175
        %p323 = pneg %p172
        %p324 = pneg %p196
        %p325 = pneg %p193
        %p326 = pneg %p222
        %p327 = pneg %p219
        %s328 = sand.u32 %s209, 1
        %s329 = scalar_lea.sflag [#allocation4], %s328
        %s330 = sand.u32 %s209, 1
        %s331 = scalar_lea.vmem [#allocation5], %s330
        %s332 = smul.u32 2, %s23
        %p333 = scmp.lt.s32.totalorder %s332, 3
        %s334 = scalar_select %p333, %s332, 3
        %s335 = smul.addr %s334, 4
        %s336 = scalar_lea.vmem %s0, %s335
        %s337 = smul.u32 2, %s23
        %s338 = smul.u32 2, %s23
        %p339 = scmp.lt.s32.totalorder %s338, 3
        %s340 = scalar_select %p339, %s338, 3
        %s341 = smul.addr %s340, 8
        %s342 = scalar_lea.vmem %s1, %s341
        %s343 = smul.u32 2, %s23
        %v345 = vld [vmem:[%s336] sm:$0xf]
        %v346 = vld [vmem:[%s336 + $0x4] sm:$0xf]
        %v347 = vld [vmem:[%s4] sm:$0xf]
        %v348 = vld [vmem:[%s4 + $0x4] sm:$0xf]
        %v349 = vld [vmem:[%s342] sm:$0xff]
        %v350 = vld [vmem:[%s342 + $0x8] sm:$0xff]
        %v351 = vcvt.s32.f32 %v349
        %v352 = vcvt.s32.f32 %v350
        %v353 = vld [vmem:[%s2] sm:$0x1]
        %355 = vset.pattern.permute.xlu0 0
        %356 = vperm.xlu0 %355, %v351
        %v357 = vpop.permute.xlu0 %356
        %360 = vset.pattern.permute.xlu0 0
        %361 = vperm.xlu0 %360, %v352
        %v362 = vpop.permute.xlu0 %361
        %v365 = vperm.slane %v353, 0
        %v367 = vmul.f32 %v357, %v365
        %v368 = vmul.f32 %v362, %v365
        %v369 = vld [vmem:[%s3] sm:$0x1]
        %v371 = vperm.slane %v369, 0
        %v373 = vadd.f32 %v367, %v371
        %v374 = vadd.f32 %v368, %v371
        %v375 = vand.u32 2147483647, %v373
        %vm376 = vcmp.le.f32.partialorder %v375, 0.7853982
        %vm377 = vcmp.lt.s32.totalorder %v373, 0
        %v378 = vand.u32 %v373, 2139095040
        %v379 = vshrl.u32 %v378, 23
        %v380 = vsub.s32 %v379, 127
        %v381 = vand.u32 2147483647, %v373
        %v382 = vand.u32 %v381, 8388607
        %v383 = vor.u32 %v382, 8388608
        %v384 = vsub.s32 0, %v383
        %v385 = vadd.s32 %v380, 1
        %vm386 = vcmp.gt.s32.totalorder %v385, 0
        %v387 = vsel %vm386, %v385, 0
        %v388 = vshrl.u32 %v387, 5
        %v389 = vand.u32 %v387, 31
        %v390 = vsub.s32 32, %v389
        %v391 = vshrl.u32 683565275, %v390
        %v392 = vshll.u32 683565275, %v389
        %v393 = vshrl.u32 2475754826, %v390
        %v394 = vor.u32 %v392, %v393
        %v395 = vshll.u32 2475754826, %v389
        %v396 = vshrl.u32 2131351028, %v390
        %v397 = vor.u32 %v395, %v396
        %v398 = vshll.u32 2131351028, %v389
        %v399 = vshrl.u32 2102212464, %v390
        %v400 = vor.u32 %v398, %v399
        %v401 = vshll.u32 2102212464, %v389
        %v402 = vshrl.u32 920167782, %v390
        %v403 = vor.u32 %v401, %v402
        %v404 = vshll.u32 920167782, %v389
        %v405 = vshrl.u32 1326507024, %v390
        %v406 = vor.u32 %v404, %v405
        %vm407 = vcmp.lt.s32.totalorder %v388, 1
        %vm408 = vcmp.lt.s32.totalorder %v388, 2
        %vm409 = vcmp.lt.s32.totalorder %v388, 3
        %vm410 = vcmp.lt.s32.totalorder %v388, 4
        %v411 = vsel %vm407, %v391, %v394
        %v412 = vsel %vm410, %v400, 2102212464
        %v413 = vsel %vm409, %v397, %v412
        %v414 = vsel %vm408, %v411, %v413
        %v415 = vsel %vm407, %v394, %v397
        %v416 = vsel %vm410, %v403, 920167782
        %v417 = vsel %vm409, %v400, %v416
        %v418 = vsel %vm408, %v415, %v417
        %v419 = vsel %vm407, %v397, %v400
        %v420 = vsel %vm410, %v406, 1326507024
        %v421 = vsel %vm409, %v403, %v420
        %v422 = vsel %vm408, %v419, %v421
        %v423 = vshll.u32 %v383, 8
        %v424 = vand.u32 %v423, 65535
        %v425 = vshrl.u32 %v423, 16
        %v426 = vand.u32 %v422, 65535
        %v427 = vshrl.u32 %v422, 16
        %v428 = vmul.u32 %v424, %v426
        %v429 = vmul.u32 %v424, %v427
        %v430 = vmul.u32 %v425, %v426
        %v431 = vmul.u32 %v425, %v427
        %v432 = vshll.u32 %v429, 16
        %v433 = vshrl.u32 %v429, 16
        %v434 = vshll.u32 %v430, 16
        %v435 = vshrl.u32 %v430, 16
        %vm436 = vc.u32 %v428, %v432
        %v437 = vsel %vm436, 1, 0
        %v438 = vadd.s32 %v428, %v432
        %v439 = vadd.s32 %v431, %v437
        %vm440 = vc.u32 %v438, %v434
        %v441 = vsel %vm440, 1, 0
        %v442 = vadd.s32 %v438, %v434
        %v443 = vadd.s32 %v439, %v441
        %v444 = vadd.s32 %v443, %v433
        %v445 = vadd.s32 %v444, %v435
        %v446 = vand.u32 %v423, 65535
        %v447 = vshrl.u32 %v423, 16
        %v448 = vand.u32 %v418, 65535
        %v449 = vshrl.u32 %v418, 16
        %v450 = vmul.u32 %v446, %v448
        %v451 = vmul.u32 %v446, %v449
        %v452 = vmul.u32 %v447, %v448
        %v453 = vmul.u32 %v447, %v449
        %v454 = vshll.u32 %v451, 16
        %v455 = vshrl.u32 %v451, 16
        %v456 = vshll.u32 %v452, 16
        %v457 = vshrl.u32 %v452, 16
        %vm458 = vc.u32 %v450, %v454
        %v459 = vsel %vm458, 1, 0
        %v460 = vadd.s32 %v450, %v454
        %v461 = vadd.s32 %v453, %v459
        %vm462 = vc.u32 %v460, %v456
        %v463 = vsel %vm462, 1, 0
        %v464 = vadd.s32 %v460, %v456
        %v465 = vadd.s32 %v461, %v463
        %v466 = vadd.s32 %v465, %v455
        %v467 = vadd.s32 %v466, %v457
        %v468 = vmul.u32 %v423, %v414
        %v469 = vadd.s32 %v445, %v464
        %vm470 = vc.u32 %v445, %v464
        %v471 = vadd.s32 %v467, 1
        %v472 = vsel %vm470, %v471, %v467
        %v473 = vadd.s32 %v468, %v472
        %v474 = vadd.s32 %v473, 536870912
        %v475 = vshrl.u32 %v474, 30
        %v476 = vshll.u32 %v475, 30
        %v477 = vsub.s32 %v473, %v476
        %vm478 = vcmp.lt.s32.totalorder %v477, 0
        %v479 = vsub.s32 0, %v477
        %v480 = vsel %vm478, %v479, %v477
        %v481 = vclz %v480
        %v482 = vsub.s32 %v481, 2
        %vm483 = vcmp.gt.s32.totalorder 0, %v482
        %v484 = vsel %vm483, 0, %v482
        %v485 = vsub.s32 32, %v484
        %v486 = vshll.u32 %v477, %v484
        %v487 = vshrl.u32 %v469, %v485
        %v488 = vor.u32 %v486, %v487
        %v489 = vsub.s32 4294967266, %v484
        %v490 = vadd.s32 %v489, 127
        %v491 = vshll.u32 %v490, 23
        %v492 = vor.u32 4788187, %v491
        %v493 = vand.u32 2147483647, %v492
        %v495 = vcvt.s32.f32 %v488
        %v496 = vmul.f32 %v495, %v493
        %v497 = vxor.u32 %v496, 2147483648
        %v498 = vsel %vm377, %v497, %v496
        %v499 = vsub.s32 4, %v475
        %v500 = vsel %vm377, %v499, %v475
        %v501 = vsel %vm376, %v373, %v498
        %v502 = vsel %vm376, 0, %v500
        %v503 = vmul.f32 %v501, %v501
        %v504 = vmul.f32 %v503, -0.001358992
        %v505 = vadd.f32 %v504, 0.041655596
        %v506 = vmul.f32 %v503, %v505
        %v507 = vadd.f32 %v506, -0.4999988
        %v508 = vmul.f32 %v503, %v507
        %v509 = vadd.f32 1.0, %v508
        %v510 = vmul.f32 %v501, %v501
        %v511 = vmul.f32 %v510, -0.00019511016
        %v512 = vadd.f32 %v511, 0.008332121
        %v513 = vmul.f32 %v510, %v512
        %v514 = vadd.f32 %v513, -0.16666654
        %v515 = vmul.f32 %v510, %v514
        %v516 = vadd.f32 %v515, 1.0
        %v517 = vmul.f32 %v516, %v501
        %vm518 = vweird.f32 %v373
        %v519 = vadd.s32 %v502, 3
        %v520 = vand.u32 %v519, 3
        %vm521 = vcmp.lt.s32.totalorder %v520, 2
        %vm522 = vcmp.eq.s32.totalorder %v520, 0
        %v523 = vxor.u32 %v517, 2147483648
        %v524 = vsel %vm522, %v509, %v523
        %vm525 = vcmp.eq.s32.totalorder %v520, 2
        %v526 = vxor.u32 %v509, 2147483648
        %v527 = vsel %vm525, %v526, %v517
        %v528 = vsel %vm521, %v524, %v527
        %v529 = vsel %vm518, nan, %v528
        %v530 = vand.u32 2147483647, %v374
        %vm531 = vcmp.le.f32.partialorder %v530, 0.7853982
        %vm532 = vcmp.lt.s32.totalorder %v374, 0
        %v533 = vand.u32 %v374, 2139095040
        %v534 = vshrl.u32 %v533, 23
        %v535 = vsub.s32 %v534, 127
        %v536 = vand.u32 2147483647, %v374
        %v537 = vand.u32 %v536, 8388607
        %v538 = vor.u32 %v537, 8388608
        %v539 = vsub.s32 0, %v538
        %v540 = vadd.s32 %v535, 1
        %vm541 = vcmp.gt.s32.totalorder %v540, 0
        %v542 = vsel %vm541, %v540, 0
        %v543 = vshrl.u32 %v542, 5
        %v544 = vand.u32 %v542, 31
        %v545 = vsub.s32 32, %v544
        %v546 = vshrl.u32 683565275, %v545
        %v547 = vshll.u32 683565275, %v544
        %v548 = vshrl.u32 2475754826, %v545
        %v549 = vor.u32 %v547, %v548
        %v550 = vshll.u32 2475754826, %v544
        %v551 = vshrl.u32 2131351028, %v545
        %v552 = vor.u32 %v550, %v551
        %v553 = vshll.u32 2131351028, %v544
        %v554 = vshrl.u32 2102212464, %v545
        %v555 = vor.u32 %v553, %v554
        %v556 = vshll.u32 2102212464, %v544
        %v557 = vshrl.u32 920167782, %v545
        %v558 = vor.u32 %v556, %v557
        %v559 = vshll.u32 920167782, %v544
        %v560 = vshrl.u32 1326507024, %v545
        %v561 = vor.u32 %v559, %v560
        %vm562 = vcmp.lt.s32.totalorder %v543, 1
        %vm563 = vcmp.lt.s32.totalorder %v543, 2
        %vm564 = vcmp.lt.s32.totalorder %v543, 3
        %vm565 = vcmp.lt.s32.totalorder %v543, 4
        %v566 = vsel %vm562, %v546, %v549
        %v567 = vsel %vm565, %v555, 2102212464
        %v568 = vsel %vm564, %v552, %v567
        %v569 = vsel %vm563, %v566, %v568
        %v570 = vsel %vm562, %v549, %v552
        %v571 = vsel %vm565, %v558, 920167782
        %v572 = vsel %vm564, %v555, %v571
        %v573 = vsel %vm563, %v570, %v572
        %v574 = vsel %vm562, %v552, %v555
        %v575 = vsel %vm565, %v561, 1326507024
        %v576 = vsel %vm564, %v558, %v575
        %v577 = vsel %vm563, %v574, %v576
        %v578 = vshll.u32 %v538, 8
        %v579 = vand.u32 %v578, 65535
        %v580 = vshrl.u32 %v578, 16
        %v581 = vand.u32 %v577, 65535
        %v582 = vshrl.u32 %v577, 16
        %v583 = vmul.u32 %v579, %v581
        %v584 = vmul.u32 %v579, %v582
        %v585 = vmul.u32 %v580, %v581
        %v586 = vmul.u32 %v580, %v582
        %v587 = vshll.u32 %v584, 16
        %v588 = vshrl.u32 %v584, 16
        %v589 = vshll.u32 %v585, 16
        %v590 = vshrl.u32 %v585, 16
        %vm591 = vc.u32 %v583, %v587
        %v592 = vsel %vm591, 1, 0
        %v593 = vadd.s32 %v583, %v587
        %v594 = vadd.s32 %v586, %v592
        %vm595 = vc.u32 %v593, %v589
        %v596 = vsel %vm595, 1, 0
        %v597 = vadd.s32 %v593, %v589
        %v598 = vadd.s32 %v594, %v596
        %v599 = vadd.s32 %v598, %v588
        %v600 = vadd.s32 %v599, %v590
        %v601 = vand.u32 %v578, 65535
        %v602 = vshrl.u32 %v578, 16
        %v603 = vand.u32 %v573, 65535
        %v604 = vshrl.u32 %v573, 16
        %v605 = vmul.u32 %v601, %v603
        %v606 = vmul.u32 %v601, %v604
        %v607 = vmul.u32 %v602, %v603
        %v608 = vmul.u32 %v602, %v604
        %v609 = vshll.u32 %v606, 16
        %v610 = vshrl.u32 %v606, 16
        %v611 = vshll.u32 %v607, 16
        %v612 = vshrl.u32 %v607, 16
        %vm613 = vc.u32 %v605, %v609
        %v614 = vsel %vm613, 1, 0
        %v615 = vadd.s32 %v605, %v609
        %v616 = vadd.s32 %v608, %v614
        %vm617 = vc.u32 %v615, %v611
        %v618 = vsel %vm617, 1, 0
        %v619 = vadd.s32 %v615, %v611
        %v620 = vadd.s32 %v616, %v618
        %v621 = vadd.s32 %v620, %v610
        %v622 = vadd.s32 %v621, %v612
        %v623 = vmul.u32 %v578, %v569
        %v624 = vadd.s32 %v600, %v619
        %vm625 = vc.u32 %v600, %v619
        %v626 = vadd.s32 %v622, 1
        %v627 = vsel %vm625, %v626, %v622
        %v628 = vadd.s32 %v623, %v627
        %v629 = vadd.s32 %v628, 536870912
        %v630 = vshrl.u32 %v629, 30
        %v631 = vshll.u32 %v630, 30
        %v632 = vsub.s32 %v628, %v631
        %vm633 = vcmp.lt.s32.totalorder %v632, 0
        %v634 = vsub.s32 0, %v632
        %v635 = vsel %vm633, %v634, %v632
        %v636 = vclz %v635
        %v637 = vsub.s32 %v636, 2
        %vm638 = vcmp.gt.s32.totalorder 0, %v637
        %v639 = vsel %vm638, 0, %v637
        %v640 = vsub.s32 32, %v639
        %v641 = vshll.u32 %v632, %v639
        %v642 = vshrl.u32 %v624, %v640
        %v643 = vor.u32 %v641, %v642
        %v644 = vsub.s32 4294967266, %v639
        %v645 = vadd.s32 %v644, 127
        %v646 = vshll.u32 %v645, 23
        %v647 = vor.u32 4788187, %v646
        %v648 = vand.u32 2147483647, %v647
        %v650 = vcvt.s32.f32 %v643
        %v651 = vmul.f32 %v650, %v648
        %v652 = vxor.u32 %v651, 2147483648
        %v653 = vsel %vm532, %v652, %v651
        %v654 = vsub.s32 4, %v630
        %v655 = vsel %vm532, %v654, %v630
        %v656 = vsel %vm531, %v374, %v653
        %v657 = vsel %vm531, 0, %v655
        %v658 = vmul.f32 %v656, %v656
        %v659 = vmul.f32 %v658, -0.001358992
        %v660 = vadd.f32 %v659, 0.041655596
        %v661 = vmul.f32 %v658, %v660
        %v662 = vadd.f32 %v661, -0.4999988
        %v663 = vmul.f32 %v658, %v662
        %v664 = vadd.f32 1.0, %v663
        %v665 = vmul.f32 %v656, %v656
        %v666 = vmul.f32 %v665, -0.00019511016
        %v667 = vadd.f32 %v666, 0.008332121
        %v668 = vmul.f32 %v665, %v667
        %v669 = vadd.f32 %v668, -0.16666654
        %v670 = vmul.f32 %v665, %v669
        %v671 = vadd.f32 %v670, 1.0
        %v672 = vmul.f32 %v671, %v656
        %vm673 = vweird.f32 %v374
        %v674 = vadd.s32 %v657, 3
        %v675 = vand.u32 %v674, 3
        %vm676 = vcmp.lt.s32.totalorder %v675, 2
        %vm677 = vcmp.eq.s32.totalorder %v675, 0
        %v678 = vxor.u32 %v672, 2147483648
        %v679 = vsel %vm677, %v664, %v678
        %vm680 = vcmp.eq.s32.totalorder %v675, 2
        %v681 = vxor.u32 %v664, 2147483648
        %v682 = vsel %vm680, %v681, %v672
        %v683 = vsel %vm676, %v679, %v682
        %v684 = vsel %vm673, nan, %v683
        %v685 = vld [vmem:[%s5] sm:$0x1]
        %v687 = vperm.slane %v685, 0
        %v691 = vunpack.c.l.b16 %v345
        %v692 = vunpack.c.l.b16 %v346
        %v693 = vpack.c.b16 %v692, %v691
        %v696 = vunpack.c.l.b16 %v347
        %v697 = vunpack.c.l.b16 %v348
        %v698 = vpack.c.b16 %v697, %v696
        %vm700 = vcmask 130048
        %v702 = vsel %vm700, %v693, 0
        %704 = vmatpush.bf16.msra.mxu0 0
        %705 = vmatpush.bf16.msra.mxu0 0
        %706 = vmatpush.bf16.msra.mxu0 0
        %707 = vmatpush.bf16.msra.mxu0 0
        %708 = vmatpush.bf16.msra.mxu0 0
        %709 = vmatpush.bf16.msra.mxu0 0
        %710 = vmatpush.bf16.msra.mxu0 0
        %711 = vmatpush.bf16.msra.mxu0 %v698
        %712 = vmatmul.bf16.gmra.mxu0 %v702
        %v713 = vpop.f32.mrf.mxu0
        %v714 = vadd.f32 %v687, %v713
        %v715 = vpop.f32.mrf.mxu0
        %v716 = vadd.f32 %v687, %v715
        %717 = vdwg.mxu0
        %v718 = vadd.f32 %v714, %v529
        %v719 = vadd.f32 %v716, %v684
        %v720 = vtanh.pop %v718
        %v721 = vtanh.pop %v719
        %v722 = vlaneseq
        %v723 = vshrl.u32 %v722, 7
        %v724 = vadd.s32 %v723, 8
        %vm725 = vcmp.lt.s32.totalorder %v723, 12
        %vm726 = vcmp.lt.s32.totalorder %v724, 12
        %v727 = vsel %vm725, %v720, -1e+30
        %v728 = vsel %vm726, %v721, -1e+30
        %v729 = vmax.f32 %v727, %v728
        %v730 = vrot.slane %v729, 4
        %v731 = vmax.f32 %v729, %v730
        %v732 = vrot.slane %v731, 2
        %v733 = vmax.f32 %v731, %v732
        %v734 = vrot.slane %v733, 1
        %v735 = vmax.f32 %v733, %v734
        %v736 = vpack.c.bf16 %v735, %v735
        %v737 = vld [vmem:[#allocation2] sm:$0xf]
        %v738 = vld [vmem:[#allocation2 + $0x4] sm:$0xf]
        %v739 = vld [vmem:[#allocation2 + $0x8] sm:$0xf]
        %v740 = vld [vmem:[#allocation2 + $0xc] sm:$0xf]
        %v741 = vld [vmem:[#allocation2 + $0x10] sm:$0xf]
        %v742 = vld [vmem:[#allocation2 + $0x14] sm:$0xf]
        %v743 = vld [vmem:[#allocation2 + $0x18] sm:$0xf]
        %v744 = vld [vmem:[#allocation2 + $0x1c] sm:$0xf]
        %v745 = vld [vmem:[#allocation2 + $0x20] sm:$0xf]
        %v746 = vld [vmem:[#allocation2 + $0x24] sm:$0xf]
        %v747 = vld [vmem:[#allocation2 + $0x28] sm:$0xf]
        %v748 = vld [vmem:[#allocation2 + $0x2c] sm:$0xf]
        %v749 = vld [vmem:[#allocation2 + $0x30] sm:$0xf]
        %v750 = vld [vmem:[#allocation2 + $0x34] sm:$0xf]
        %v751 = vld [vmem:[#allocation2 + $0x38] sm:$0xf]
        %v752 = vld [vmem:[#allocation2 + $0x3c] sm:$0xf]
        %v753 = vld [vmem:[%s7] sm:$0x1]
        %v770 = vunpack.c.l.b16 %v737
        %v771 = vunpack.c.l.b16 %v738
        %v772 = vunpack.c.l.b16 %v739
        %v773 = vunpack.c.l.b16 %v740
        %v774 = vunpack.c.l.b16 %v741
        %v775 = vunpack.c.l.b16 %v742
        %v776 = vunpack.c.l.b16 %v743
        %v777 = vunpack.c.l.b16 %v744
        %v778 = vunpack.c.l.b16 %v745
        %v779 = vunpack.c.l.b16 %v746
        %v780 = vunpack.c.l.b16 %v747
        %v781 = vunpack.c.l.b16 %v748
        %v782 = vunpack.c.l.b16 %v749
        %v783 = vunpack.c.l.b16 %v750
        %v784 = vunpack.c.l.b16 %v751
        %v785 = vunpack.c.l.b16 %v752
        %v786 = vpack.c.b16 %v771, %v770
        %v787 = vpack.c.b16 %v773, %v772
        %v788 = vpack.c.b16 %v775, %v774
        %v789 = vpack.c.b16 %v777, %v776
        %v790 = vpack.c.b16 %v779, %v778
        %v791 = vpack.c.b16 %v781, %v780
        %v792 = vpack.c.b16 %v783, %v782
        %v793 = vpack.c.b16 %v785, %v784
        %802 = vmatpush.bf16.msra.mxu0 %v793
        %803 = vmatpush.bf16.msra.mxu0 %v792
        %804 = vmatpush.bf16.msra.mxu0 %v791
        %805 = vmatpush.bf16.msra.mxu0 %v790
        %806 = vmatpush.bf16.msra.mxu0 %v789
        %807 = vmatpush.bf16.msra.mxu0 %v788
        %808 = vmatpush.bf16.msra.mxu0 %v787
        %809 = vmatpush.bf16.msra.mxu0 %v786
        %810 = vmatmul.bf16.gmra.mxu0 %v736
        %v811 = vpop.f32.mrf.mxu0
        %v812 = vadd.f32 %v753, %v811
        %v813 = vpop.f32.mrf.mxu0
        %814 = vdwg.mxu0
        %815 = vst [vmem:[%s331] sm:$0x1] %v812
        %s816 = sand.u32 %s209, 1
        %s817 = scalar_lea.sflag [#allocation4], %s816
        %s818 = sand.u32 %s209, 1
        %s819 = scalar_lea.vmem [#allocation5], %s818
        // Predicated region
        $region57: #{tpu_custom_call.1} parent=51 // pred_check
          %p820 = pneg %p219
        $region58: #{tpu_custom_call.1} parent=51 // pred_check_branch
          %822 = sbr.rel (%p820) target = $region60
        $region59: #{tpu_custom_call.1} parent=51 // pred_region
          %824 = vsyncadd %s817, 0
          %s825 = scalar_lea.hbm %s8, %s23
          %s827 = sshll.u32 %s819, 4
          %s828 = int_to_ptr.vmem [resolvable:$true] %s827
          %s829 = sshll.u32 %s825, 4
          %s830 = int_to_ptr.hbm [resolvable:$true] %s829
          %832 = dma.vmem_to_hbm [thread:$0]  %s828, 16, %s830, %s817
        $region60: #{tpu_custom_call.1} parent=51 // pred_fallthru
          _
      $region52: #{tpu_custom_call.1} parent=5 // pred_fallthru
        _
      %p833 = scmp.le.s32.totalorder 2, %s18
      // Predicated region
      $region61: #{tpu_custom_call.1} parent=5 // pred_check
        %p834 = pneg %p833
      $region62: #{tpu_custom_call.1} parent=5 // pred_check_branch
        %836 = sbr.rel (%p834) target = $region64
      $region63: #{tpu_custom_call.1} parent=5 // pred_region
        %s837 = ssub.s32 %s18, 2
        // Predicated region
        $region65: #{tpu_custom_call.1} parent=63 // pred_check
          %p838 = pneg %p225
        $region66: #{tpu_custom_call.1} parent=63 // pred_check_branch
          %840 = sbr.rel (%p838) target = $region68
        $region67: #{tpu_custom_call.1} parent=63 // pred_region
          %s841 = sand.u32 %s210, 1
          %s842 = scalar_lea.sflag [#allocation4], %s841
          %s843 = sand.u32 %s210, 1
          %s844 = scalar_lea.vmem [#allocation5], %s843
          %846 = dma.done %s842, 16
        $region68: #{tpu_custom_call.1} parent=63 // pred_fallthru
          _
      $region64: #{tpu_custom_call.1} parent=5 // pred_fallthru
        _
    $region6: #{tpu_custom_call.1} parent=1 // loop_footer
      %s22 = sadd.s32 1, %s18
    $region7: #{tpu_custom_call.1} parent=1 // loop_footer_branch
      %17 = sbr.rel target = $region3
    $region8: #{tpu_custom_call.1} parent=1 // loop_exit
      _
    %847 = vsyncpa [#allocation3], 1
    %s848 = scalar_lea.sflag [#allocation3], 1
    %849 = vsyncpa %s848, 1
    %850 = vsyncpa [#allocation4], 1
    %s851 = scalar_lea.sflag [#allocation4], 1
    %852 = vsyncpa %s851, 1

</llo_original>
